<compile_context>
chip_gen: v7x
topology: tpu7x:2x2x1
jax: 0.10.0
libtpu: 0.0.40
codegen_flags: <defaults>
</compile_context>

<pallas_src>
import jax
import jax.numpy as jnp
from jax.experimental import pallas as pl
from jax.experimental.pallas import tpu as pltpu

EPS = 1e-5


def _round_up(x, m):
    return ((x + m - 1) // m) * m


def basic_layer_kernel(x_ref, w_ref, gamma_ref, beta_ref, o_ref, acc_ref):
    k = pl.program_id(1)

    @pl.when(k == 0)
    def _init():
        acc_ref[...] = jnp.zeros_like(acc_ref)

    # Linear (no bias): accumulate (B, TILE_K) @ (TILE_K, TILE_N) on the MXU.
    acc_ref[...] += jnp.dot(x_ref[...], w_ref[...],
                            preferred_element_type=jnp.float32)

    @pl.when(k == pl.num_programs(1) - 1)
    def _finalize():
        h = acc_ref[...]                                   # (B, TILE_N) f32
        inv_b = 1.0 / h.shape[0]
        # Single-pass batch statistics (per-feature over the full batch).
        mean = jnp.sum(h, axis=0, keepdims=True) * inv_b           # (1, TILE_N)
        mean_sq = jnp.sum(h * h, axis=0, keepdims=True) * inv_b
        var = mean_sq - mean * mean                                 # biased var
        inv_std = jax.lax.rsqrt(var + EPS)                          # EUP slot
        # Fused BN affine: y = h * scale + shift.
        scale = gamma_ref[...] * inv_std
        shift = beta_ref[...] - mean * scale
        # ReLU + store (lane-dense (B, TILE_N) tile).
        o_ref[...] = jnp.maximum(h * scale + shift, 0.0).astype(o_ref.dtype)


def basic_layer(x, w_t, gamma, beta, *, tile_n=256, tile_k=512):
    """x: (B, n_in) f32, w_t: (n_in, n_out) f32, gamma/beta: (1, n_out) f32."""
    B, n_in = x.shape
    n_out = w_t.shape[1]

    # Lane-aligned tile sizes (multiples of 128), never larger than the padded dims.
    tile_n = min(tile_n, _round_up(n_out, 128))
    tile_k = min(tile_k, _round_up(n_in, 128))
    n_out_p = _round_up(n_out, tile_n)
    n_in_p = _round_up(n_in, tile_k)

    # Zero-pad K (does not change x @ W) and N (extra columns sliced off below).
    if n_in_p != n_in:
        x = jnp.pad(x, ((0, 0), (0, n_in_p - n_in)))
        w_t = jnp.pad(w_t, ((0, n_in_p - n_in), (0, 0)))
    if n_out_p != n_out:
        w_t = jnp.pad(w_t, ((0, 0), (0, n_out_p - n_out)))
        gamma = jnp.pad(gamma, ((0, 0), (0, n_out_p - n_out)),
                        constant_values=1.0)
        beta = jnp.pad(beta, ((0, 0), (0, n_out_p - n_out)))

    grid = (n_out_p // tile_n, n_in_p // tile_k)

    out = pl.pallas_call(
        basic_layer_kernel,
        out_shape=jax.ShapeDtypeStruct((B, n_out_p), jnp.float32),
        grid_spec=pltpu.PrefetchScalarGridSpec(
            num_scalar_prefetch=0,
            grid=grid,
            in_specs=[
                pl.BlockSpec((B, tile_k), lambda j, k: (0, k)),       # x
                pl.BlockSpec((tile_k, tile_n), lambda j, k: (k, j)),  # W
                pl.BlockSpec((1, tile_n), lambda j, k: (0, j)),       # gamma
                pl.BlockSpec((1, tile_n), lambda j, k: (0, j)),       # beta
            ],
            out_specs=pl.BlockSpec((B, tile_n), lambda j, k: (0, j)),
            scratch_shapes=[pltpu.VMEM((B, tile_n), jnp.float32)],
        ),
        compiler_params=pltpu.CompilerParams(
            # n_out tiles are independent (BN stats are per-feature) -> parallel;
            # K is the reduction axis carrying the accumulator -> arbitrary.
            dimension_semantics=("parallel", "arbitrary"),
            vmem_limit_bytes=48 * 1024 * 1024,
        ),
    )(x, w_t, gamma, beta)

    return out[:, :n_out]


def basic_layer_ref(x, w_t, gamma, beta):
    h = x @ w_t
    mean = jnp.mean(h, axis=0, keepdims=True)
    var = jnp.mean((h - mean) ** 2, axis=0, keepdims=True)
    y = (h - mean) / jnp.sqrt(var + EPS) * gamma + beta
    return jnp.maximum(y, 0.0)


if __name__ == "__main__":
    # Small but multi-tile shapes (exercise both grid axes + padding path).
    B, n_in, n_out = 8, 200, 300

    key = jax.random.PRNGKey(0)
    kx, kw = jax.random.split(key)

    x = jax.random.normal(kx, (B, n_in), dtype=jnp.float32)

    # Synthetic Linear(n_in, n_out, bias=False) weight, stored transposed.
    bound = 1.0 / (n_in ** 0.5)
    w_t = jax.random.uniform(kw, (n_in, n_out), dtype=jnp.float32,
                             minval=-bound, maxval=bound)
    # BatchNorm1d affine params (default init: gamma=1, beta=0).
    gamma = jnp.ones((1, n_out), dtype=jnp.float32)
    beta = jnp.zeros((1, n_out), dtype=jnp.float32)

    out = basic_layer(x, w_t, gamma, beta, tile_n=128, tile_k=128)
    out = jax.block_until_ready(out)

    ref = basic_layer_ref(x, w_t, gamma, beta)
    assert out.shape == (B, n_out)
    assert jnp.allclose(out, ref, atol=1e-4, rtol=1e-4)

    print("KERNEL_OK")
</pallas_src>

<mosaic_0001>
module attributes {stable_mosaic.version = 11 : i64} {
  func.func @basic_layer_kernel(%arg0: i32, %arg1: i32, %arg2: memref<8x128xf32, #tpu.memory_space<vmem>>, %arg3: memref<128x128xf32, #tpu.memory_space<vmem>>, %arg4: memref<1x128xf32, #tpu.memory_space<vmem>>, %arg5: memref<1x128xf32, #tpu.memory_space<vmem>>, %arg6: memref<8x128xf32, #tpu.memory_space<vmem>>, %arg7: memref<8x128xf32, #tpu.memory_space<vmem>>) attributes {dimension_semantics = [#tpu.dimension_semantics<parallel>, #tpu.dimension_semantics<arbitrary>], iteration_bounds = array<i64: 3, 2>, scalar_prefetch = 0 : i64, scratch_operands = 1 : i64, tpu.core_type = #tpu.core_type<tc>, window_params = [{transform_indices = @transform_0, window_bounds = array<i64: 8, 128>}, {transform_indices = @transform_1, window_bounds = array<i64: 128, 128>}, {transform_indices = @transform_2, window_bounds = array<i64: 1, 128>}, {transform_indices = @transform_3, window_bounds = array<i64: 1, 128>}, {transform_indices = @transform_4, window_bounds = array<i64: 8, 128>}]} {
    %c0_i32 = arith.constant 0 : i32
    %0 = arith.cmpi eq, %arg1, %c0_i32 : i32
    %1 = arith.extui %0 : i1 to i32
    %c0_i32_0 = arith.constant 0 : i32
    %2 = arith.cmpi ne, %1, %c0_i32_0 : i32
    scf.if %2 {
      %cst_9 = arith.constant 0.000000e+00 : f32
      %12 = vector.broadcast %cst_9 : f32 to vector<8x128xf32>
      %c0_10 = arith.constant 0 : index
      %c0_11 = arith.constant 0 : index
      %13 = vector.load %arg7[%c0_10, %c0_11] : memref<8x128xf32, #tpu.memory_space<vmem>>, vector<8x128xf32>
      tpu.vector_store %arg7[%c0_10, %c0_11], %12 {strides = array<i32>} : memref<8x128xf32, #tpu.memory_space<vmem>>, vector<8x128xf32>,
    } else {
    }
    %c0 = arith.constant 0 : index
    %c0_1 = arith.constant 0 : index
    %3 = vector.load %arg7[%c0, %c0_1] : memref<8x128xf32, #tpu.memory_space<vmem>>, vector<8x128xf32>
    %c0_2 = arith.constant 0 : index
    %c0_3 = arith.constant 0 : index
    %4 = vector.load %arg2[%c0_2, %c0_3] : memref<8x128xf32, #tpu.memory_space<vmem>>, vector<8x128xf32>
    %c0_4 = arith.constant 0 : index
    %c0_5 = arith.constant 0 : index
    %5 = vector.load %arg3[%c0_4, %c0_5] : memref<128x128xf32, #tpu.memory_space<vmem>>, vector<128x128xf32>
    %cst = arith.constant dense<0.000000e+00> : vector<8x128xf32>
    %6 = tpu.matmul %4, %5, %cst {dimension_numbers = #tpu.dot_dimension_numbers<[1], [0], [0], [1], [0, 0, 1, 1], [], []>} : vector<8x128xf32>, vector<128x128xf32>, vector<8x128xf32> -> vector<8x128xf32>
    %7 = arith.addf %3, %6 : vector<8x128xf32>
    %c0_6 = arith.constant 0 : index
    %c0_7 = arith.constant 0 : index
    %8 = vector.load %arg7[%c0_6, %c0_7] : memref<8x128xf32, #tpu.memory_space<vmem>>, vector<8x128xf32>
    tpu.vector_store %arg7[%c0_6, %c0_7], %7 {strides = array<i32>} : memref<8x128xf32, #tpu.memory_space<vmem>>, vector<8x128xf32>,
    %c1_i32 = arith.constant 1 : i32
    %9 = arith.cmpi eq, %arg1, %c1_i32 : i32
    %10 = arith.extui %9 : i1 to i32
    %c0_i32_8 = arith.constant 0 : i32
    %11 = arith.cmpi ne, %10, %c0_i32_8 : i32
    scf.if %11 {
      %c0_9 = arith.constant 0 : index
      %c0_10 = arith.constant 0 : index
      %12 = vector.load %arg7[%c0_9, %c0_10] : memref<8x128xf32, #tpu.memory_space<vmem>>, vector<8x128xf32>
      %cst_11 = arith.constant dense<0.000000e+00> : vector<128xf32>
      %13 = vector.multi_reduction <add>, %12, %cst_11 [0] : vector<8x128xf32> to vector<128xf32>
      %14 = vector.shape_cast %13 : vector<128xf32> to vector<1x128xf32>
      %cst_12 = arith.constant 1.250000e-01 : f32
      %15 = vector.broadcast %cst_12 : f32 to vector<1x128xf32>
      %16 = arith.mulf %14, %15 : vector<1x128xf32>
      %17 = arith.mulf %12, %12 : vector<8x128xf32>
      %cst_13 = arith.constant dense<0.000000e+00> : vector<128xf32>
      %18 = vector.multi_reduction <add>, %17, %cst_13 [0] : vector<8x128xf32> to vector<128xf32>
      %19 = vector.shape_cast %18 : vector<128xf32> to vector<1x128xf32>
      %cst_14 = arith.constant 1.250000e-01 : f32
      %20 = vector.broadcast %cst_14 : f32 to vector<1x128xf32>
      %21 = arith.mulf %19, %20 : vector<1x128xf32>
      %22 = arith.mulf %16, %16 : vector<1x128xf32>
      %23 = arith.subf %21, %22 : vector<1x128xf32>
      %cst_15 = arith.constant 9.99999974E-6 : f32
      %24 = vector.broadcast %cst_15 : f32 to vector<1x128xf32>
      %25 = arith.addf %23, %24 : vector<1x128xf32>
      %26 = math.rsqrt %25 : vector<1x128xf32>
      %c0_16 = arith.constant 0 : index
      %c0_17 = arith.constant 0 : index
      %27 = vector.load %arg4[%c0_16, %c0_17] : memref<1x128xf32, #tpu.memory_space<vmem>>, vector<1x128xf32>
      %28 = arith.mulf %27, %26 : vector<1x128xf32>
      %c0_18 = arith.constant 0 : index
      %c0_19 = arith.constant 0 : index
      %29 = vector.load %arg5[%c0_18, %c0_19] : memref<1x128xf32, #tpu.memory_space<vmem>>, vector<1x128xf32>
      %30 = arith.mulf %16, %28 : vector<1x128xf32>
      %31 = arith.subf %29, %30 : vector<1x128xf32>
      %32 = vector.broadcast %28 : vector<1x128xf32> to vector<8x128xf32>
      %33 = arith.mulf %12, %32 : vector<8x128xf32>
      %34 = vector.broadcast %31 : vector<1x128xf32> to vector<8x128xf32>
      %35 = arith.addf %33, %34 : vector<8x128xf32>
      %cst_20 = arith.constant 0.000000e+00 : f32
      %36 = vector.broadcast %cst_20 : f32 to vector<8x128xf32>
      %37 = arith.maximumf %35, %36 : vector<8x128xf32>
      %c0_21 = arith.constant 0 : index
      %c0_22 = arith.constant 0 : index
      %38 = vector.load %arg6[%c0_21, %c0_22] : memref<8x128xf32, #tpu.memory_space<vmem>>, vector<8x128xf32>
      tpu.vector_store %arg6[%c0_21, %c0_22], %37 {strides = array<i32>} : memref<8x128xf32, #tpu.memory_space<vmem>>, vector<8x128xf32>,
    } else {
    }
    return
  }
  func.func @transform_0(%arg0: i32, %arg1: i32) -> (i32, i32) {
    %c0_i32 = arith.constant 0 : i32
    %c0_i32_0 = arith.constant 0 : i32
    return %c0_i32, %arg1 : i32, i32
  }
  func.func @transform_1(%arg0: i32, %arg1: i32) -> (i32, i32) {
    %c0_i32 = arith.constant 0 : i32
    return %arg1, %arg0 : i32, i32
  }
  func.func @transform_2(%arg0: i32, %arg1: i32) -> (i32, i32) {
    %c0_i32 = arith.constant 0 : i32
    %c0_i32_0 = arith.constant 0 : i32
    return %c0_i32, %arg0 : i32, i32
  }
  func.func @transform_3(%arg0: i32, %arg1: i32) -> (i32, i32) {
    %c0_i32 = arith.constant 0 : i32
    %c0_i32_0 = arith.constant 0 : i32
    return %c0_i32, %arg0 : i32, i32
  }
  func.func @transform_4(%arg0: i32, %arg1: i32) -> (i32, i32) {
    %c0_i32 = arith.constant 0 : i32
    %c0_i32_0 = arith.constant 0 : i32
    return %c0_i32, %arg0 : i32, i32
  }
}

</mosaic_0001>

<llo_original>
// kernel: tpu_custom_call.1
$region0: #{tpu_custom_call.1}
  #allocation0 [shape = 'u32[]', space=smem, size = 0x4, offset = 0x4, fixed_abs, tag = 'smem constant byte address 0x4 - core index']
  #allocation1 [shape = 'u32[144,128]{1,0:T(1,128)}', space=vmem, size = 0x12000, scoped, tag = 'internal scratch']
  #allocation2 [shape = 'f32[8,128]{1,0:T(8,128)}', space=vmem, size = 0x1000, scoped, tag = 'scratch operand']
  %s0 = inlined_call_operand.hbm [shape: f32[8,256], index: 0, kind: input, shape index: {}]
  %s1 = inlined_call_operand.hbm [shape: f32[256,384], index: 1, kind: input, shape index: {}]
  %s2 = inlined_call_operand.vmem [shape: f32[1,384], index: 2, kind: input, shape index: {}]
  %s3 = inlined_call_operand.vmem [shape: f32[1,384], index: 3, kind: input, shape index: {}]
  %s4 = inlined_call_operand.hbm [shape: f32[8,384], index: 4, kind: output, shape index: {}]
  %s5 = sld [smem:[#allocation0]]
  $region65: #{tpu_custom_call.1} parent=0
    _
  %s7 = ssub.s32 1, %s5
  %s8 = scalar_select 0, %s7, %s5
  $region1: #{tpu_custom_call.1} parent=0
    #allocation3 [shape = 'u8[8192]{0}', space=vmem, size = 0x2000, scoped, tag = 'input window, operand 0']
    #allocation4 [shape = 's32[2]{0}', space=sflag, size = 0x8, scoped, tag = 'scoped memory for tpu_custom_call.1']
    #allocation5 [shape = 's32[2]{0}', space=sflag, size = 0x8, scoped, tag = 'scoped memory for tpu_custom_call.1']
    #allocation6 [shape = 'u8[131072]{0}', space=vmem, size = 0x20000, scoped, tag = 'input window, operand 1']
    #allocation7 [shape = 's32[2]{0}', space=sflag, size = 0x8, scoped, tag = 'scoped memory for tpu_custom_call.1']
    #allocation8 [shape = 'u8[8192]{0}', space=vmem, size = 0x2000, scoped, tag = 'output window, operand 0']
    %9 = vsyncpa [#allocation4], 0
    %s10 = scalar_lea.sflag [#allocation4], 1
    %11 = vsyncpa %s10, 0
    %12 = vsyncpa [#allocation7], 0
    %s13 = scalar_lea.sflag [#allocation7], 1
    %14 = vsyncpa %s13, 0
    %15 = vsyncpa [#allocation5], 0
    %s16 = scalar_lea.sflag [#allocation5], 1
    %17 = vsyncpa %s16, 0
    loop: start=0, step=1, limit=8
    $region2: #{tpu_custom_call.1} parent=1 // loop_pre_header
      _
    $region3: #{tpu_custom_call.1} parent=1 // loop_header
      %s19 = sphi 0, %s23
      %p20 = scmp.ge.s32.totalorder %s19, 8
      %s26 = sphi 0, %s38
      %s27 = sphi 0, %s34
      %s28 = sphi 0, %s26
      %s29 = sphi 0, %s27
      %s30 = sphi 0, %s28
      %s31 = sphi 0, %s29
      %s41 = sphi 0, %s43
      %s44 = sphi 0, %s41
      %s45 = sphi 0, %s44
      %s61 = sphi 0, %s45
      %s69 = sphi 0, %s71
      %s72 = sphi 0, %s69
      %s73 = sphi 0, %s72
      %s89 = sphi 0, %s73
      %s95 = sphi 0, %s97
      %s98 = sphi 0, %s95
      %s99 = sphi 0, %s98
      %s115 = sphi 0, %s99
      %s121 = sphi 0, %s123
      %s124 = sphi 0, %s121
      %s125 = sphi 0, %s124
      %s141 = sphi 0, %s125
      %s147 = sphi 0, %s149
      %s150 = sphi 0, %s147
      %s151 = sphi 0, %s150
      %s167 = sphi 0, %s151
    $region4: #{tpu_custom_call.1} parent=1 // loop_header_branch
      %22 = sbr.rel (%p20) target = $region8
    $region5: #{tpu_custom_call.1} parent=1 // loop_body
      %s24 = ssub.s32 %s19, 1
      %s25 = ssub.s32 %s19, 2
      %s32 = sadd.s32 1, %s27
      %p33 = scmp.ge.s32.totalorder %s32, 2
      %s34 = scalar_select %p33, 0, %s32
      %s35 = sadd.s32 1, %s26
      %s36 = scalar_select %p33, %s35, %s26
      %p37 = scmp.ge.s32.totalorder %s36, 3
      %s38 = scalar_select %p37, 0, %s36
      %s39 = ssub.s32 %s27, %s34
      %p40 = scmp.eq.s32.totalorder %s39, 0
      %s42 = sadd.s32 %s41, 1
      %s43 = scalar_select %p40, %s41, %s42
      %p46 = pneg %p40
      %p47 = scmp.eq.s32.totalorder %s19, 5
      %p48 = por %p46, %p47
      %p49 = scmp.ne.s32.totalorder %s41, %s44
      %p50 = scmp.eq.s32.totalorder %s19, 0
      %p51 = por %p49, %p50
      %p52 = scmp.ne.s32.totalorder %s41, %s44
      %p53 = scmp.eq.s32.totalorder %s24, 5
      %p54 = por %p52, %p53
      %p55 = scmp.ne.s32.totalorder %s44, %s45
      %p56 = scmp.eq.s32.totalorder %s24, 0
      %p57 = por %p55, %p56
      %p58 = scmp.ne.s32.totalorder %s44, %s45
      %p59 = scmp.eq.s32.totalorder %s25, 5
      %p60 = por %p58, %p59
      %p62 = scmp.ne.s32.totalorder %s45, %s61
      %p63 = scmp.eq.s32.totalorder %s25, 0
      %p64 = por %p62, %p63
      %s65 = ssub.s32 %s27, %s34
      %s66 = ssub.s32 %s26, %s38
      %s67 = sor.u32 %s65, %s66
      %p68 = scmp.eq.s32.totalorder %s67, 0
      %s70 = sadd.s32 %s69, 1
      %s71 = scalar_select %p68, %s69, %s70
      %p74 = pneg %p68
      %p75 = scmp.eq.s32.totalorder %s19, 5
      %p76 = por %p74, %p75
      %p77 = scmp.ne.s32.totalorder %s69, %s72
      %p78 = scmp.eq.s32.totalorder %s19, 0
      %p79 = por %p77, %p78
      %p80 = scmp.ne.s32.totalorder %s69, %s72
      %p81 = scmp.eq.s32.totalorder %s24, 5
      %p82 = por %p80, %p81
      %p83 = scmp.ne.s32.totalorder %s72, %s73
      %p84 = scmp.eq.s32.totalorder %s24, 0
      %p85 = por %p83, %p84
      %p86 = scmp.ne.s32.totalorder %s72, %s73
      %p87 = scmp.eq.s32.totalorder %s25, 5
      %p88 = por %p86, %p87
      %p90 = scmp.ne.s32.totalorder %s73, %s89
      %p91 = scmp.eq.s32.totalorder %s25, 0
      %p92 = por %p90, %p91
      %s93 = ssub.s32 %s26, %s38
      %p94 = scmp.eq.s32.totalorder %s93, 0
      %s96 = sadd.s32 %s95, 1
      %s97 = scalar_select %p94, %s95, %s96
      %p100 = pneg %p94
      %p101 = scmp.eq.s32.totalorder %s19, 5
      %p102 = por %p100, %p101
      %p103 = scmp.ne.s32.totalorder %s95, %s98
      %p104 = scmp.eq.s32.totalorder %s19, 0
      %p105 = por %p103, %p104
      %p106 = scmp.ne.s32.totalorder %s95, %s98
      %p107 = scmp.eq.s32.totalorder %s24, 5
      %p108 = por %p106, %p107
      %p109 = scmp.ne.s32.totalorder %s98, %s99
      %p110 = scmp.eq.s32.totalorder %s24, 0
      %p111 = por %p109, %p110
      %p112 = scmp.ne.s32.totalorder %s98, %s99
      %p113 = scmp.eq.s32.totalorder %s25, 5
      %p114 = por %p112, %p113
      %p116 = scmp.ne.s32.totalorder %s99, %s115
      %p117 = scmp.eq.s32.totalorder %s25, 0
      %p118 = por %p116, %p117
      %s119 = ssub.s32 %s26, %s38
      %p120 = scmp.eq.s32.totalorder %s119, 0
      %s122 = sadd.s32 %s121, 1
      %s123 = scalar_select %p120, %s121, %s122
      %p126 = pneg %p120
      %p127 = scmp.eq.s32.totalorder %s19, 5
      %p128 = por %p126, %p127
      %p129 = scmp.ne.s32.totalorder %s121, %s124
      %p130 = scmp.eq.s32.totalorder %s19, 0
      %p131 = por %p129, %p130
      %p132 = scmp.ne.s32.totalorder %s121, %s124
      %p133 = scmp.eq.s32.totalorder %s24, 5
      %p134 = por %p132, %p133
      %p135 = scmp.ne.s32.totalorder %s124, %s125
      %p136 = scmp.eq.s32.totalorder %s24, 0
      %p137 = por %p135, %p136
      %p138 = scmp.ne.s32.totalorder %s124, %s125
      %p139 = scmp.eq.s32.totalorder %s25, 5
      %p140 = por %p138, %p139
      %p142 = scmp.ne.s32.totalorder %s125, %s141
      %p143 = scmp.eq.s32.totalorder %s25, 0
      %p144 = por %p142, %p143
      %s145 = ssub.s32 %s26, %s38
      %p146 = scmp.eq.s32.totalorder %s145, 0
      %s148 = sadd.s32 %s147, 1
      %s149 = scalar_select %p146, %s147, %s148
      %p152 = pneg %p146
      %p153 = scmp.eq.s32.totalorder %s19, 5
      %p154 = por %p152, %p153
      %p155 = scmp.ne.s32.totalorder %s147, %s150
      %p156 = scmp.eq.s32.totalorder %s19, 0
      %p157 = por %p155, %p156
      %p158 = scmp.ne.s32.totalorder %s147, %s150
      %p159 = scmp.eq.s32.totalorder %s24, 5
      %p160 = por %p158, %p159
      %p161 = scmp.ne.s32.totalorder %s150, %s151
      %p162 = scmp.eq.s32.totalorder %s24, 0
      %p163 = por %p161, %p162
      %p164 = scmp.ne.s32.totalorder %s150, %s151
      %p165 = scmp.eq.s32.totalorder %s25, 5
      %p166 = por %p164, %p165
      %p168 = scmp.ne.s32.totalorder %s151, %s167
      %p169 = scmp.eq.s32.totalorder %s25, 0
      %p170 = por %p168, %p169
      %p171 = scmp.le.s32.totalorder 1, %s19
      %p172 = scmp.lt.s32.totalorder %s19, 7
      %p173 = pnand %p171, %p172
      %p174 = pneg %p173
      // Predicated region
      $region9: #{tpu_custom_call.1} parent=5 // pred_check
        _
      $region10: #{tpu_custom_call.1} parent=5 // pred_check_branch
        %176 = sbr.rel (%p173) target = $region12
      $region11: #{tpu_custom_call.1} parent=5 // pred_region
        %s177 = ssub.s32 %s19, 1
      $region12: #{tpu_custom_call.1} parent=5 // pred_fallthru
        _
      %p178 = scmp.lt.s32.totalorder %s19, 6
      // Predicated region
      $region13: #{tpu_custom_call.1} parent=5 // pred_check
        %p179 = pneg %p178
      $region14: #{tpu_custom_call.1} parent=5 // pred_check_branch
        %181 = sbr.rel (%p179) target = $region16
      $region15: #{tpu_custom_call.1} parent=5 // pred_region
        // Predicated region
        $region17: #{tpu_custom_call.1} parent=15 // pred_check
          %p182 = pneg %p51
        $region18: #{tpu_custom_call.1} parent=15 // pred_check_branch
          %184 = sbr.rel (%p182) target = $region20
        $region19: #{tpu_custom_call.1} parent=15 // pred_region
          %s185 = sand.u32 %s41, 1
          %s186 = scalar_lea.sflag [#allocation4], %s185
          %s187 = sand.u32 %s41, 1
          %s188 = smul.addr %s187, 8
          %s189 = scalar_lea.vmem [#allocation3], %s188
          %s191 = ssub.s32 128, 128
          %192 = vsyncadd %s186, %s191
          %s193 = smul.addr %s27, 128
          %s194 = scalar_lea.hbm %s0, %s193
          %s196 = sshll.u32 %s189, 4
          %s197 = int_to_ptr.vmem [resolvable:$true] %s196
          %199 = dma.hbm_to_vmem [thread:$0]  %s194, 128, %s197, %s186
        $region20: #{tpu_custom_call.1} parent=15 // pred_fallthru
          _
        // Predicated region
        $region21: #{tpu_custom_call.1} parent=15 // pred_check
          %p200 = pneg %p79
        $region22: #{tpu_custom_call.1} parent=15 // pred_check_branch
          %202 = sbr.rel (%p200) target = $region24
        $region23: #{tpu_custom_call.1} parent=15 // pred_region
          %s203 = sand.u32 %s69, 1
          %s204 = scalar_lea.sflag [#allocation7], %s203
          %s205 = sand.u32 %s69, 1
          %s206 = smul.addr %s205, 128
          %s207 = scalar_lea.vmem [#allocation6], %s206
          %s208 = smul.u32 16, %s27
          %s210 = ssub.s32 2048, 2048
          %211 = vsyncadd %s204, %s210
          %s212 = smul.addr %s208, 3
          %s213 = sadd.s32 %s26, %s212
          %s214 = smul.addr %s213, 128
          %s215 = scalar_lea.hbm %s1, %s214
          %s216 = sshll.u32 %s207, 4
          %s217 = int_to_ptr.vmem [resolvable:$true] %s216
          %222 = dma.hbm_to_vmem [thread:$0]  %s215, 2048, %s217, %s204, 384, 128, 8
        $region24: #{tpu_custom_call.1} parent=15 // pred_fallthru
          _
        // Predicated region
        $region25: #{tpu_custom_call.1} parent=15 // pred_check
          %p223 = pneg %p105
        $region26: #{tpu_custom_call.1} parent=15 // pred_check_branch
          %225 = sbr.rel (%p223) target = $region28
        $region27: #{tpu_custom_call.1} parent=15 // pred_region
          %p226 = scmp.lt.s32.totalorder %s26, 2
          %s227 = scalar_select %p226, %s26, 2
          %s228 = scalar_lea.vmem %s2, %s227
        $region28: #{tpu_custom_call.1} parent=15 // pred_fallthru
          _
        // Predicated region
        $region29: #{tpu_custom_call.1} parent=15 // pred_check
          %p229 = pneg %p131
        $region30: #{tpu_custom_call.1} parent=15 // pred_check_branch
          %231 = sbr.rel (%p229) target = $region32
        $region31: #{tpu_custom_call.1} parent=15 // pred_region
          %p232 = scmp.lt.s32.totalorder %s26, 2
          %s233 = scalar_select %p232, %s26, 2
          %s234 = scalar_lea.vmem %s3, %s233
        $region32: #{tpu_custom_call.1} parent=15 // pred_fallthru
          _
      $region16: #{tpu_custom_call.1} parent=5 // pred_fallthru
        _
      %p235 = scmp.le.s32.totalorder 1, %s19
      %p236 = scmp.lt.s32.totalorder %s19, 7
      %p237 = pnand %p235, %p236
      %p238 = pneg %p237
      // Predicated region
      $region33: #{tpu_custom_call.1} parent=5 // pred_check
        _
      $region34: #{tpu_custom_call.1} parent=5 // pred_check_branch
        %240 = sbr.rel (%p237) target = $region36
      $region35: #{tpu_custom_call.1} parent=5 // pred_region
        %s241 = ssub.s32 %s19, 1
        %s242 = sand.u32 %s44, 1
        %s243 = scalar_lea.sflag [#allocation4], %s242
        %s244 = sand.u32 %s44, 1
        %s245 = smul.addr %s244, 8
        %s246 = scalar_lea.vmem [#allocation3], %s245
        // Predicated region
        $region37: #{tpu_custom_call.1} parent=35 // pred_check
          %p247 = pneg %p57
        $region38: #{tpu_custom_call.1} parent=35 // pred_check_branch
          %249 = sbr.rel (%p247) target = $region40
        $region39: #{tpu_custom_call.1} parent=35 // pred_region
          %250 = dma.done %s243, 128
        $region40: #{tpu_custom_call.1} parent=35 // pred_fallthru
          _
        %s251 = sand.u32 %s72, 1
        %s252 = scalar_lea.sflag [#allocation7], %s251
        %s253 = sand.u32 %s72, 1
        %s254 = smul.addr %s253, 128
        %s255 = scalar_lea.vmem [#allocation6], %s254
        // Predicated region
        $region41: #{tpu_custom_call.1} parent=35 // pred_check
          %p256 = pneg %p85
        $region42: #{tpu_custom_call.1} parent=35 // pred_check_branch
          %258 = sbr.rel (%p256) target = $region44
        $region43: #{tpu_custom_call.1} parent=35 // pred_region
          %259 = dma.done %s252, 2048
        $region44: #{tpu_custom_call.1} parent=35 // pred_fallthru
          _
        %s260 = sand.u32 %s44, 1
        %s261 = scalar_lea.sflag [#allocation4], %s260
        %s262 = sand.u32 %s44, 1
        %s263 = smul.addr %s262, 8
        %s264 = scalar_lea.vmem [#allocation3], %s263
        %p265 = pneg %p57
        %p266 = pneg %p54
        %s267 = sand.u32 %s72, 1
        %s268 = scalar_lea.sflag [#allocation7], %s267
        %s269 = sand.u32 %s72, 1
        %s270 = smul.addr %s269, 128
        %s271 = scalar_lea.vmem [#allocation6], %s270
        %p272 = pneg %p85
        %p273 = pneg %p82
        %p274 = scmp.lt.s32.totalorder %s28, 2
        %s275 = scalar_select %p274, %s28, 2
        %s276 = scalar_lea.vmem %s2, %s275
        %p277 = pneg %p111
        %p278 = pneg %p108
        %p279 = scmp.lt.s32.totalorder %s28, 2
        %s280 = scalar_select %p279, %s28, 2
        %s281 = scalar_lea.vmem %s3, %s280
        %p282 = pneg %p137
        %p283 = pneg %p134
        %p284 = pneg %p163
        %p285 = pneg %p160
        %s286 = sand.u32 %s150, 1
        %s287 = scalar_lea.sflag [#allocation5], %s286
        %s288 = sand.u32 %s150, 1
        %s289 = smul.addr %s288, 8
        %s290 = scalar_lea.vmem [#allocation8], %s289
        %s291 = smul.u32 16, %s29
        %p292 = scmp.lt.s32.totalorder %s28, 2
        %s293 = scalar_select %p292, %s28, 2
        %s294 = scalar_lea.vmem %s2, %s293
        %p295 = scmp.lt.s32.totalorder %s28, 2
        %s296 = scalar_select %p295, %s28, 2
        %s297 = scalar_lea.vmem %s3, %s296
        %p298 = scmp.eq.s32.totalorder %s29, 0
        // Predicated region
        $region45: #{tpu_custom_call.1} parent=35 // pred_check
          %p299 = pneg %p298
        $region46: #{tpu_custom_call.1} parent=35 // pred_check_branch
          %301 = sbr.rel (%p299) target = $region48
        $region47: #{tpu_custom_call.1} parent=35 // pred_region
          %302 = vst [vmem:[#allocation2] sm:$0xff] 0.0
        $region48: #{tpu_custom_call.1} parent=35 // pred_fallthru
          _
        %v303 = vld [vmem:[#allocation2] sm:$0xff]
        %v304 = vld [vmem:[%s246] sm:$0xff]
        %v305 = vld [vmem:[%s255] sm:$0xff]
        %v306 = vld [vmem:[%s255 + $0x8] sm:$0xff]
        %v307 = vld [vmem:[%s255 + $0x10] sm:$0xff]
        %v308 = vld [vmem:[%s255 + $0x18] sm:$0xff]
        %v309 = vld [vmem:[%s255 + $0x20] sm:$0xff]
        %v310 = vld [vmem:[%s255 + $0x28] sm:$0xff]
        %v311 = vld [vmem:[%s255 + $0x30] sm:$0xff]
        %v312 = vld [vmem:[%s255 + $0x38] sm:$0xff]
        %v313 = vld [vmem:[%s255 + $0x40] sm:$0xff]
        %v314 = vld [vmem:[%s255 + $0x48] sm:$0xff]
        %v315 = vld [vmem:[%s255 + $0x50] sm:$0xff]
        %v316 = vld [vmem:[%s255 + $0x58] sm:$0xff]
        %v317 = vld [vmem:[%s255 + $0x60] sm:$0xff]
        %v318 = vld [vmem:[%s255 + $0x68] sm:$0xff]
        %v319 = vld [vmem:[%s255 + $0x70] sm:$0xff]
        %v320 = vld [vmem:[%s255 + $0x78] sm:$0xff]
        %321 = vmatprep.subr.mxu0 0.0
        %322 = vmatpush1.msra.mxu0 %v305
        %323 = vmatprep.subr.mxu0 0.0
        %324 = vmatpush1.msra.mxu0 %v306
        %325 = vmatprep.subr.mxu0 0.0
        %326 = vmatpush1.msra.mxu0 %v307
        %327 = vmatprep.subr.mxu0 0.0
        %328 = vmatpush1.msra.mxu0 %v308
        %329 = vmatprep.subr.mxu0 0.0
        %330 = vmatpush1.msra.mxu0 %v309
        %331 = vmatprep.subr.mxu0 0.0
        %332 = vmatpush1.msra.mxu0 %v310
        %333 = vmatprep.subr.mxu0 0.0
        %334 = vmatpush1.msra.mxu0 %v311
        %335 = vmatprep.subr.mxu0 0.0
        %336 = vmatpush1.msra.mxu0 %v312
        %337 = vmatprep.subr.mxu0 0.0
        %338 = vmatpush1.msra.mxu0 %v313
        %339 = vmatprep.subr.mxu0 0.0
        %340 = vmatpush1.msra.mxu0 %v314
        %341 = vmatprep.subr.mxu0 0.0
        %342 = vmatpush1.msra.mxu0 %v315
        %343 = vmatprep.subr.mxu0 0.0
        %344 = vmatpush1.msra.mxu0 %v316
        %345 = vmatprep.subr.mxu0 0.0
        %346 = vmatpush1.msra.mxu0 %v317
        %347 = vmatprep.subr.mxu0 0.0
        %348 = vmatpush1.msra.mxu0 %v318
        %349 = vmatprep.subr.mxu0 0.0
        %350 = vmatpush1.msra.mxu0 %v319
        %351 = vmatprep.subr.mxu0 0.0
        %352 = vmatpush1.msra.mxu0 %v320
        %353 = vmatprep.subr.mxu0 0.0
        %354 = vmatpush1.msra.mxu0 0.0
        %355 = vmatprep.subr.mxu0 0.0
        %356 = vmatpush1.msra.mxu0 0.0
        %357 = vmatprep.subr.mxu0 0.0
        %358 = vmatpush1.msra.mxu0 0.0
        %359 = vmatprep.subr.mxu0 0.0
        %360 = vmatpush1.msra.mxu0 0.0
        %361 = vmatprep.subr.mxu0 0.0
        %362 = vmatpush1.msra.mxu0 0.0
        %363 = vmatprep.subr.mxu0 0.0
        %364 = vmatpush1.msra.mxu0 0.0
        %365 = vmatprep.subr.mxu0 0.0
        %366 = vmatpush1.msra.mxu0 0.0
        %367 = vmatprep.subr.mxu0 0.0
        %368 = vmatpush1.msra.mxu0 0.0
        %369 = vmatprep.subr.mxu0 0.0
        %370 = vmatpush1.msra.mxu0 0.0
        %371 = vmatprep.subr.mxu0 0.0
        %372 = vmatpush1.msra.mxu0 0.0
        %373 = vmatprep.subr.mxu0 0.0
        %374 = vmatpush1.msra.mxu0 0.0
        %375 = vmatprep.subr.mxu0 0.0
        %376 = vmatpush1.msra.mxu0 0.0
        %377 = vmatprep.subr.mxu0 0.0
        %378 = vmatpush1.msra.mxu0 0.0
        %379 = vmatprep.subr.mxu0 0.0
        %380 = vmatpush1.msra.mxu0 0.0
        %381 = vmatprep.subr.mxu0 0.0
        %382 = vmatpush1.msra.mxu0 0.0
        %383 = vmatprep.subr.mxu0 0.0
        %384 = vmatpush1.msra.mxu0 0.0
        %385 = vmatprep.mubr.f32.mxu0 0.0
        %386 = vmatmul.mubr.f32.gmra.mrb[0].mxu0 %v304
        %v387 = vpop.f32.mrb[0].mxu0
        %v388 = vadd.f32 0.0, %v387
        %v389 = vpop.f32.mrb[0].mxu0
        %390 = vdwg.mxu0
        %v391 = vadd.f32 %v303, %v388
        %392 = vst [vmem:[#allocation2] sm:$0xff] %v391
        %p393 = scmp.eq.s32.totalorder %s29, 1
        // Predicated region
        $region49: #{tpu_custom_call.1} parent=35 // pred_check
          %p394 = pneg %p393
        $region50: #{tpu_custom_call.1} parent=35 // pred_check_branch
          %396 = sbr.rel (%p394) target = $region52
        $region51: #{tpu_custom_call.1} parent=35 // pred_region
          %v397 = vld [vmem:[#allocation2] sm:$0xff]
          %v398 = vrot.slane %v397, 4
          %v399 = vadd.f32 %v397, %v398
          %v400 = vrot.slane %v399, 2
          %v401 = vadd.f32 %v399, %v400
          %v402 = vrot.slane %v401, 1
          %v403 = vadd.f32 %v401, %v402
          %v404 = vmul.f32 %v403, 0.125
          %v405 = vmul.f32 %v397, %v397
          %v406 = vrot.slane %v405, 4
          %v407 = vadd.f32 %v405, %v406
          %v408 = vrot.slane %v407, 2
          %v409 = vadd.f32 %v407, %v408
          %v410 = vrot.slane %v409, 1
          %v411 = vadd.f32 %v409, %v410
          %v412 = vmul.f32 %v411, 0.125
          %v413 = vmul.f32 %v404, %v404
          %v414 = vsub.f32 %v412, %v413
          %v415 = vadd.f32 %v414, 1e-05
          %v416 = vrsqrt.pop %v415
          %v417 = vld [vmem:[%s294] sm:$0x1]
          %v418 = vmul.f32 %v417, %v416
          %v419 = vld [vmem:[%s297] sm:$0x1]
          %v420 = vmul.f32 %v404, %v418
          %v421 = vsub.f32 %v419, %v420
          %v423 = vlaneseq
          %v424 = vshrl.u32 %v423, 7
          %v425 = vsub.s32 0, %v424
          %v426 = vrot.slane %v418, %v425
          %v428 = vmul.f32 %v397, %v426
          %v430 = vlaneseq
          %v431 = vshrl.u32 %v430, 7
          %v432 = vsub.s32 0, %v431
          %v433 = vrot.slane %v421, %v432
          %v435 = vadd.f32 %v428, %v433
          %v436 = vmax.f32 %v435, 0.0
          %437 = vst [vmem:[%s290] sm:$0xff] %v436
        $region52: #{tpu_custom_call.1} parent=35 // pred_fallthru
          _
        %s438 = sand.u32 %s150, 1
        %s439 = scalar_lea.sflag [#allocation5], %s438
        %s440 = sand.u32 %s150, 1
        %s441 = smul.addr %s440, 8
        %s442 = scalar_lea.vmem [#allocation8], %s441
        // Predicated region
        $region53: #{tpu_custom_call.1} parent=35 // pred_check
          %p443 = pneg %p160
        $region54: #{tpu_custom_call.1} parent=35 // pred_check_branch
          %445 = sbr.rel (%p443) target = $region56
        $region55: #{tpu_custom_call.1} parent=35 // pred_region
          %s447 = ssub.s32 128, 128
          %448 = vsyncadd %s439, %s447
          %s449 = smul.addr %s28, 128
          %s450 = scalar_lea.hbm %s4, %s449
          %s452 = sshll.u32 %s442, 4
          %s453 = int_to_ptr.vmem [resolvable:$true] %s452
          %455 = dma.vmem_to_hbm [thread:$0]  %s453, 128, %s450, %s439
        $region56: #{tpu_custom_call.1} parent=35 // pred_fallthru
          _
      $region36: #{tpu_custom_call.1} parent=5 // pred_fallthru
        _
      %p456 = scmp.le.s32.totalorder 2, %s19
      // Predicated region
      $region57: #{tpu_custom_call.1} parent=5 // pred_check
        %p457 = pneg %p456
      $region58: #{tpu_custom_call.1} parent=5 // pred_check_branch
        %459 = sbr.rel (%p457) target = $region60
      $region59: #{tpu_custom_call.1} parent=5 // pred_region
        %s460 = ssub.s32 %s19, 2
        // Predicated region
        $region61: #{tpu_custom_call.1} parent=59 // pred_check
          %p461 = pneg %p166
        $region62: #{tpu_custom_call.1} parent=59 // pred_check_branch
          %463 = sbr.rel (%p461) target = $region64
        $region63: #{tpu_custom_call.1} parent=59 // pred_region
          %s464 = sand.u32 %s151, 1
          %s465 = scalar_lea.sflag [#allocation5], %s464
          %s466 = sand.u32 %s151, 1
          %s467 = smul.addr %s466, 8
          %s468 = scalar_lea.vmem [#allocation8], %s467
          %469 = dma.done %s465, 128
        $region64: #{tpu_custom_call.1} parent=59 // pred_fallthru
          _
      $region60: #{tpu_custom_call.1} parent=5 // pred_fallthru
        _
    $region6: #{tpu_custom_call.1} parent=1 // loop_footer
      %s23 = sadd.s32 1, %s19
    $region7: #{tpu_custom_call.1} parent=1 // loop_footer_branch
      %18 = sbr.rel target = $region3
    $region8: #{tpu_custom_call.1} parent=1 // loop_exit
      _
    %470 = vsyncpa [#allocation4], 1
    %s471 = scalar_lea.sflag [#allocation4], 1
    %472 = vsyncpa %s471, 1
    %473 = vsyncpa [#allocation7], 1
    %s474 = scalar_lea.sflag [#allocation7], 1
    %475 = vsyncpa %s474, 1
    %476 = vsyncpa [#allocation5], 1
    %s477 = scalar_lea.sflag [#allocation5], 1
    %478 = vsyncpa %s477, 1

</llo_original>
